<compile_context>
chip_gen: v6e
topology: v6e:2x2x1
jax: 0.10.0
libtpu: 0.0.40
codegen_flags: <defaults>
</compile_context>

<pallas_src>
import functools

import jax
import jax.numpy as jnp
from jax.experimental import pallas as pl
from jax.experimental.pallas import tpu as pltpu


def _round_up(x, m):
    return ((x + m - 1) // m) * m


def _sensor_kernel(pts_ref, w_ref, b_ref, wl_ref, bl_ref, out_ref, *,
                   tb, n_pts, width, row_off, in_rows, mm_dtype):
    """One batch-block: per-point MLP, max-pool, heads — all resident in VMEM.

    pts_ref : (TB*N, F_pad)   current batch block, points flattened into rows
    w_ref   : (R_total, 64)   weights of layers 0..6, zero-padded & row-concat
    b_ref   : (8, 64)         biases of layers 0..6 (f32), zero-padded
    wl_ref  : (64, 128)       final layer weight, zero-padded to 128 lanes
    bl_ref  : (1, 128)        final layer bias (f32), zero-padded
    out_ref : (TB, 128)       sigmoid(logits); only column 0 is meaningful
    """

    def lin(h, li, relu=True):
        r0 = row_off[li]
        w = w_ref[r0:r0 + in_rows[li], :]          # static, sublane-aligned slice
        b = b_ref[li:li + 1, :]                    # (1, 64), broadcasts
        z = jnp.dot(h.astype(mm_dtype), w,
                    preferred_element_type=jnp.float32) + b
        return jnp.maximum(z, 0.0) if relu else z

    x = pts_ref[...]                               # (TB*N, F_pad)

    # point_feature_extractor + feature_processor: 4 tall matmuls over TB*N rows
    h = lin(x, 0)
    h = lin(h, 1)
    h = lin(h, 2)
    h = lin(h, 3)                                  # (TB*N, 64) f32

    # global max over the points axis (== torch.max(..., dim=1)[0])
    g = jnp.max(h.reshape(tb, n_pts, width), axis=1)   # (TB, 64)

    # spatial_mapper + first info_gain layer, batched over the TB block
    g = lin(g, 4)
    g = lin(g, 5)
    g = lin(g, 6)

    # final Linear padded to a lane-dense 128-wide output; column 0 is real
    logits = jnp.dot(g.astype(mm_dtype), wl_ref[...],
                     preferred_element_type=jnp.float32) + bl_ref[...]
    out_ref[...] = jax.nn.sigmoid(logits)          # dense (TB, 128) store


def _pack_params(params, f_pad, width, out_pad, w_dtype):
    """Zero-pad every Linear to an aligned block.

    Layers 0..6 are concatenated row-wise into one (R_total, width) weight slab
    plus an (8, width) bias slab; the final layer is padded to a lane-dense
    (width, out_pad) block.  Padding is exact zeros, so results are unchanged
    (padded activation columns stay identically zero through ReLU)."""
    assert f_pad % 8 == 0 and width % 8 == 0 and out_pad % 128 == 0, (
        "packed layout requires sublane/lane-aligned padding")

    w_blocks, b_rows, row_off, in_rows = [], [], [], []
    r = 0
    for li, (w, b) in enumerate(params[:-1]):
        w = jnp.asarray(w, jnp.float32)
        b = jnp.asarray(b, jnp.float32).reshape(1, -1)
        k_in = f_pad if li == 0 else width
        assert w.shape[0] <= k_in and w.shape[1] <= width
        wp = jnp.zeros((k_in, width), jnp.float32).at[:w.shape[0], :w.shape[1]].set(w)
        bp = jnp.zeros((1, width), jnp.float32).at[:, :b.shape[1]].set(b)
        w_blocks.append(wp)
        b_rows.append(bp)
        row_off.append(r)
        in_rows.append(k_in)
        r += k_in

    n_b = len(b_rows)
    nb_pad = _round_up(n_b, 8)
    if nb_pad > n_b:
        b_rows.append(jnp.zeros((nb_pad - n_b, width), jnp.float32))
    w_slab = jnp.concatenate(w_blocks, axis=0).astype(w_dtype)   # (R_total, width)
    b_slab = jnp.concatenate(b_rows, axis=0)                     # (8, width) f32

    w8, b8 = params[-1]
    w8 = jnp.asarray(w8, jnp.float32)
    b8 = jnp.asarray(b8, jnp.float32).reshape(1, -1)
    assert w8.shape[0] <= width and w8.shape[1] <= out_pad
    w_last = (jnp.zeros((width, out_pad), jnp.float32)
              .at[:w8.shape[0], :w8.shape[1]].set(w8)).astype(w_dtype)
    b_last = jnp.zeros((1, out_pad), jnp.float32).at[:, :b8.shape[1]].set(b8)

    return w_slab, b_slab, w_last, b_last, tuple(row_off), tuple(in_rows)


def sensor_placement_forward(points, params, *, hidden_dim=64, use_bf16=False,
                             max_block_batch=None):
    """points: [B, N, F] float32; params: list of 8 (W [in,out], b [1,out])."""
    points = jnp.asarray(points, jnp.float32)
    B, N, F = points.shape
    width = hidden_dim
    f_pad = _round_up(F, 8)
    n_pad = _round_up(N, 8)
    out_pad = 128
    w_dtype = jnp.bfloat16 if use_bf16 else jnp.float32

    w_slab, b_slab, w_last, b_last, row_off, in_rows = _pack_params(
        params, f_pad, width, out_pad, w_dtype)

    # ---- batch blocking ---------------------------------------------------
    # Rough per-batch-element VMEM cost of one grid step: lane-padded
    # (n_pad, 128) f32 points tile (x2 double-buffered) plus a handful of live
    # (n_pad, width) f32 activation tiles.  Pick the largest TB inside a
    # ~24 MiB working-set budget to amortize the per-step pipeline overhead.
    per_elem_bytes = n_pad * 128 * 4 * 2 + n_pad * width * 4 * 6
    tb_cap = max(8, min(512, ((24 << 20) // per_elem_bytes) // 8 * 8))
    if max_block_batch is not None:
        tb_cap = max(8, min(tb_cap, _round_up(max_block_batch, 8)))
    tb = min(_round_up(B, 8), tb_cap)
    # v7x megacore: for big batches keep >= 2 grid steps so the "parallel"
    # axis can shard across both TensorCores (no effect on v5e/v6e).
    if B > 64 and _round_up(B, tb) // tb < 2:
        tb = max(8, _round_up(pl.cdiv(B, 2), 8))
    b_pad = _round_up(B, tb)
    num_blocks = b_pad // tb

    # ---- pad inputs in the wrapper -----------------------------------------
    # Batch padded with zeros (sliced off afterwards); points axis padded by
    # replicating the last real point (max-pool invariant, keeps the reshape
    # tile-aligned); feature dim zero-padded to 8.
    pts = jnp.zeros((b_pad, n_pad, f_pad), jnp.float32)
    pts = pts.at[:B, :N, :F].set(points)
    if n_pad > N:
        pts = pts.at[:B, N:, :F].set(
            jnp.broadcast_to(points[:, -1:, :], (B, n_pad - N, F)))
    pts = pts.reshape(b_pad * n_pad, f_pad)

    kernel = functools.partial(
        _sensor_kernel, tb=tb, n_pts=n_pad, width=width,
        row_off=row_off, in_rows=in_rows, mm_dtype=w_dtype)

    resident = dict(pipeline_mode=pl.Buffered(1))  # constant-index inputs: no double-buffer

    out = pl.pallas_call(
        kernel,
        out_shape=jax.ShapeDtypeStruct((b_pad, out_pad), jnp.float32),
        grid_spec=pltpu.PrefetchScalarGridSpec(
            num_scalar_prefetch=0,
            grid=(num_blocks,),
            in_specs=[
                pl.BlockSpec((tb * n_pad, f_pad), lambda bi: (bi, 0)),
                pl.BlockSpec(w_slab.shape, lambda bi: (0, 0), **resident),
                pl.BlockSpec(b_slab.shape, lambda bi: (0, 0), **resident),
                pl.BlockSpec(w_last.shape, lambda bi: (0, 0), **resident),
                pl.BlockSpec(b_last.shape, lambda bi: (0, 0), **resident),
            ],
            out_specs=pl.BlockSpec((tb, out_pad), lambda bi: (bi, 0)),
        ),
        compiler_params=pltpu.CompilerParams(
            dimension_semantics=("parallel",),
            vmem_limit_bytes=48 * 1024 * 1024),
    )(pts, w_slab, b_slab, w_last, b_last)

    # Column 0 holds the real prediction; drop batch padding.
    return out[:B, :1]


def make_linear_params(key, fan_in, fan_out):
    """Deterministic PyTorch-style init: U(-1/sqrt(fan_in), 1/sqrt(fan_in))."""
    kw, kb = jax.random.split(key)
    bound = 1.0 / (fan_in ** 0.5)
    w = jax.random.uniform(kw, (fan_in, fan_out), jnp.float32, -bound, bound)
    b = jax.random.uniform(kb, (1, fan_out), jnp.float32, -bound, bound)
    return w, b


def reference_forward(points, params):
    """Pure-JAX reference matching the PyTorch forward (visibility=None)."""
    (w1, b1), (w2, b2), (w3, b3), (w4, b4), (w5, b5), (w6, b6), (w7, b7), (w8, b8) = params
    relu = lambda z: jnp.maximum(z, 0.0)
    h = relu(points @ w1 + b1)
    h = relu(h @ w2 + b2)
    h = relu(h @ w3 + b3)
    h = relu(h @ w4 + b4)
    g = jnp.max(h, axis=1)                       # [B, H]
    s = relu(g @ w5 + b5)
    s = relu(s @ w6 + b6)
    p = relu(s @ w7 + b7)
    return jax.nn.sigmoid(p @ w8 + b8)           # [B, 1]


if __name__ == "__main__":
    # Small, module-consistent shapes: point clouds of N=16 points, F=3 coords.
    N, F = 16, 3
    hidden, out_dim = 64, 1

    key = jax.random.PRNGKey(0)
    k_pts, k_pts2, *k_layers = jax.random.split(key, 10)

    layer_dims = [
        (F, hidden), (hidden, hidden),                       # point_feature_extractor
        (hidden, hidden), (hidden, hidden),                  # feature_processor
        (hidden, hidden // 2), (hidden // 2, hidden // 4),   # spatial_mapper
        (hidden // 4, hidden // 8), (hidden // 8, out_dim),  # info_gain_predictor
    ]
    params = [make_linear_params(k, fi, fo)
              for k, (fi, fo) in zip(k_layers, layer_dims)]

    # 1) Exact f32 path (bit-matches the reference module), B=2.
    B = 2
    points = jax.random.normal(k_pts, (B, N, F), dtype=jnp.float32)
    out_f32 = jax.block_until_ready(
        sensor_placement_forward(points, params, hidden_dim=hidden, use_bf16=False))
    ref = reference_forward(points, params)
    assert out_f32.shape == (B, 1), out_f32.shape
    assert jnp.allclose(out_f32, ref, atol=1e-4, rtol=1e-4), (out_f32, ref)

    # 2) bf16-MXU path on a larger batch with a small forced block size, so the
    #    multi-block grid + batch padding path is exercised too.
    B2 = 20
    points2 = jax.random.normal(k_pts2, (B2, N, F), dtype=jnp.float32)
    out_bf16 = jax.block_until_ready(
        sensor_placement_forward(points2, params, hidden_dim=hidden,
                                 use_bf16=True, max_block_batch=8))
    ref2 = reference_forward(points2, params)
    assert out_bf16.shape == (B2, 1), out_bf16.shape
    assert jnp.max(jnp.abs(out_bf16 - ref2)) < 5e-2, (out_bf16, ref2)

    print("KERNEL_OK")
</pallas_src>

<mosaic_0001>
module attributes {stable_mosaic.version = 11 : i64} {
  func.func @_sensor_kernel(%arg0: i32, %arg1: memref<128x8xf32, #tpu.memory_space<vmem>>, %arg2: memref<392x64xf32, #tpu.memory_space<vmem>>, %arg3: memref<8x64xf32, #tpu.memory_space<vmem>>, %arg4: memref<64x128xf32, #tpu.memory_space<vmem>>, %arg5: memref<1x128xf32, #tpu.memory_space<vmem>>, %arg6: memref<8x128xf32, #tpu.memory_space<vmem>>) attributes {dimension_semantics = [#tpu.dimension_semantics<parallel>], iteration_bounds = array<i64: 1>, scalar_prefetch = 0 : i64, scratch_operands = 0 : i64, tpu.core_type = #tpu.core_type<tc>, window_params = [{transform_indices = @transform_0, window_bounds = array<i64: 128, 8>}, {pipeline_mode = #tpu.pipeline_mode<synchronous>, transform_indices = @transform_1, window_bounds = array<i64: 392, 64>}, {pipeline_mode = #tpu.pipeline_mode<synchronous>, transform_indices = @transform_2, window_bounds = array<i64: 8, 64>}, {pipeline_mode = #tpu.pipeline_mode<synchronous>, transform_indices = @transform_3, window_bounds = array<i64: 64, 128>}, {pipeline_mode = #tpu.pipeline_mode<synchronous>, transform_indices = @transform_4, window_bounds = array<i64: 1, 128>}, {transform_indices = @transform_5, window_bounds = array<i64: 8, 128>}]} {
    %c0 = arith.constant 0 : index
    %c0_0 = arith.constant 0 : index
    %0 = vector.load %arg1[%c0, %c0_0] : memref<128x8xf32, #tpu.memory_space<vmem>>, vector<128x8xf32>
    %c0_1 = arith.constant 0 : index
    %c0_2 = arith.constant 0 : index
    %1 = vector.load %arg2[%c0_1, %c0_2] : memref<392x64xf32, #tpu.memory_space<vmem>>, vector<8x64xf32>
    %c0_3 = arith.constant 0 : index
    %c0_4 = arith.constant 0 : index
    %2 = vector.load %arg3[%c0_3, %c0_4] : memref<8x64xf32, #tpu.memory_space<vmem>>, vector<1x64xf32>
    %cst = arith.constant dense<0.000000e+00> : vector<128x64xf32>
    %3 = tpu.matmul %0, %1, %cst {dimension_numbers = #tpu.dot_dimension_numbers<[1], [0], [0], [1], [0, 0, 1, 1], [], []>} : vector<128x8xf32>, vector<8x64xf32>, vector<128x64xf32> -> vector<128x64xf32>
    %4 = vector.broadcast %2 : vector<1x64xf32> to vector<128x64xf32>
    %5 = arith.addf %3, %4 : vector<128x64xf32>
    %cst_5 = arith.constant 0.000000e+00 : f32
    %6 = vector.broadcast %cst_5 : f32 to vector<128x64xf32>
    %7 = arith.maximumf %5, %6 : vector<128x64xf32>
    %c8 = arith.constant 8 : index
    %c0_6 = arith.constant 0 : index
    %8 = vector.load %arg2[%c8, %c0_6] : memref<392x64xf32, #tpu.memory_space<vmem>>, vector<64x64xf32>
    %c1 = arith.constant 1 : index
    %c0_7 = arith.constant 0 : index
    %9 = vector.load %arg3[%c1, %c0_7] : memref<8x64xf32, #tpu.memory_space<vmem>>, vector<1x64xf32>
    %cst_8 = arith.constant dense<0.000000e+00> : vector<128x64xf32>
    %10 = tpu.matmul %7, %8, %cst_8 {dimension_numbers = #tpu.dot_dimension_numbers<[1], [0], [0], [1], [0, 0, 1, 1], [], []>} : vector<128x64xf32>, vector<64x64xf32>, vector<128x64xf32> -> vector<128x64xf32>
    %11 = vector.broadcast %9 : vector<1x64xf32> to vector<128x64xf32>
    %12 = arith.addf %10, %11 : vector<128x64xf32>
    %cst_9 = arith.constant 0.000000e+00 : f32
    %13 = vector.broadcast %cst_9 : f32 to vector<128x64xf32>
    %14 = arith.maximumf %12, %13 : vector<128x64xf32>
    %c72 = arith.constant 72 : index
    %c0_10 = arith.constant 0 : index
    %15 = vector.load %arg2[%c72, %c0_10] : memref<392x64xf32, #tpu.memory_space<vmem>>, vector<64x64xf32>
    %c2 = arith.constant 2 : index
    %c0_11 = arith.constant 0 : index
    %16 = vector.load %arg3[%c2, %c0_11] : memref<8x64xf32, #tpu.memory_space<vmem>>, vector<1x64xf32>
    %cst_12 = arith.constant dense<0.000000e+00> : vector<128x64xf32>
    %17 = tpu.matmul %14, %15, %cst_12 {dimension_numbers = #tpu.dot_dimension_numbers<[1], [0], [0], [1], [0, 0, 1, 1], [], []>} : vector<128x64xf32>, vector<64x64xf32>, vector<128x64xf32> -> vector<128x64xf32>
    %18 = vector.broadcast %16 : vector<1x64xf32> to vector<128x64xf32>
    %19 = arith.addf %17, %18 : vector<128x64xf32>
    %cst_13 = arith.constant 0.000000e+00 : f32
    %20 = vector.broadcast %cst_13 : f32 to vector<128x64xf32>
    %21 = arith.maximumf %19, %20 : vector<128x64xf32>
    %c136 = arith.constant 136 : index
    %c0_14 = arith.constant 0 : index
    %22 = vector.load %arg2[%c136, %c0_14] : memref<392x64xf32, #tpu.memory_space<vmem>>, vector<64x64xf32>
    %c3 = arith.constant 3 : index
    %c0_15 = arith.constant 0 : index
    %23 = vector.load %arg3[%c3, %c0_15] : memref<8x64xf32, #tpu.memory_space<vmem>>, vector<1x64xf32>
    %cst_16 = arith.constant dense<0.000000e+00> : vector<128x64xf32>
    %24 = tpu.matmul %21, %22, %cst_16 {dimension_numbers = #tpu.dot_dimension_numbers<[1], [0], [0], [1], [0, 0, 1, 1], [], []>} : vector<128x64xf32>, vector<64x64xf32>, vector<128x64xf32> -> vector<128x64xf32>
    %25 = vector.broadcast %23 : vector<1x64xf32> to vector<128x64xf32>
    %26 = arith.addf %24, %25 : vector<128x64xf32>
    %cst_17 = arith.constant 0.000000e+00 : f32
    %27 = vector.broadcast %cst_17 : f32 to vector<128x64xf32>
    %28 = arith.maximumf %26, %27 : vector<128x64xf32>
    %29 = vector.shape_cast %28 : vector<128x64xf32> to vector<8x16x64xf32>
    %cst_18 = arith.constant dense<0xFF800000> : vector<8x64xf32>
    %30 = vector.multi_reduction <maximumf>, %29, %cst_18 [1] : vector<8x16x64xf32> to vector<8x64xf32>
    %c200 = arith.constant 200 : index
    %c0_19 = arith.constant 0 : index
    %31 = vector.load %arg2[%c200, %c0_19] : memref<392x64xf32, #tpu.memory_space<vmem>>, vector<64x64xf32>
    %c4 = arith.constant 4 : index
    %c0_20 = arith.constant 0 : index
    %32 = vector.load %arg3[%c4, %c0_20] : memref<8x64xf32, #tpu.memory_space<vmem>>, vector<1x64xf32>
    %cst_21 = arith.constant dense<0.000000e+00> : vector<8x64xf32>
    %33 = tpu.matmul %30, %31, %cst_21 {dimension_numbers = #tpu.dot_dimension_numbers<[1], [0], [0], [1], [0, 0, 1, 1], [], []>} : vector<8x64xf32>, vector<64x64xf32>, vector<8x64xf32> -> vector<8x64xf32>
    %34 = vector.broadcast %32 : vector<1x64xf32> to vector<8x64xf32>
    %35 = arith.addf %33, %34 : vector<8x64xf32>
    %cst_22 = arith.constant 0.000000e+00 : f32
    %36 = vector.broadcast %cst_22 : f32 to vector<8x64xf32>
    %37 = arith.maximumf %35, %36 : vector<8x64xf32>
    %c264 = arith.constant 264 : index
    %c0_23 = arith.constant 0 : index
    %38 = vector.load %arg2[%c264, %c0_23] : memref<392x64xf32, #tpu.memory_space<vmem>>, vector<64x64xf32>
    %c5 = arith.constant 5 : index
    %c0_24 = arith.constant 0 : index
    %39 = vector.load %arg3[%c5, %c0_24] : memref<8x64xf32, #tpu.memory_space<vmem>>, vector<1x64xf32>
    %cst_25 = arith.constant dense<0.000000e+00> : vector<8x64xf32>
    %40 = tpu.matmul %37, %38, %cst_25 {dimension_numbers = #tpu.dot_dimension_numbers<[1], [0], [0], [1], [0, 0, 1, 1], [], []>} : vector<8x64xf32>, vector<64x64xf32>, vector<8x64xf32> -> vector<8x64xf32>
    %41 = vector.broadcast %39 : vector<1x64xf32> to vector<8x64xf32>
    %42 = arith.addf %40, %41 : vector<8x64xf32>
    %cst_26 = arith.constant 0.000000e+00 : f32
    %43 = vector.broadcast %cst_26 : f32 to vector<8x64xf32>
    %44 = arith.maximumf %42, %43 : vector<8x64xf32>
    %c328 = arith.constant 328 : index
    %c0_27 = arith.constant 0 : index
    %45 = vector.load %arg2[%c328, %c0_27] : memref<392x64xf32, #tpu.memory_space<vmem>>, vector<64x64xf32>
    %c6 = arith.constant 6 : index
    %c0_28 = arith.constant 0 : index
    %46 = vector.load %arg3[%c6, %c0_28] : memref<8x64xf32, #tpu.memory_space<vmem>>, vector<1x64xf32>
    %cst_29 = arith.constant dense<0.000000e+00> : vector<8x64xf32>
    %47 = tpu.matmul %44, %45, %cst_29 {dimension_numbers = #tpu.dot_dimension_numbers<[1], [0], [0], [1], [0, 0, 1, 1], [], []>} : vector<8x64xf32>, vector<64x64xf32>, vector<8x64xf32> -> vector<8x64xf32>
    %48 = vector.broadcast %46 : vector<1x64xf32> to vector<8x64xf32>
    %49 = arith.addf %47, %48 : vector<8x64xf32>
    %cst_30 = arith.constant 0.000000e+00 : f32
    %50 = vector.broadcast %cst_30 : f32 to vector<8x64xf32>
    %51 = arith.maximumf %49, %50 : vector<8x64xf32>
    %c0_31 = arith.constant 0 : index
    %c0_32 = arith.constant 0 : index
    %52 = vector.load %arg4[%c0_31, %c0_32] : memref<64x128xf32, #tpu.memory_space<vmem>>, vector<64x128xf32>
    %cst_33 = arith.constant dense<0.000000e+00> : vector<8x128xf32>
    %53 = tpu.matmul %51, %52, %cst_33 {dimension_numbers = #tpu.dot_dimension_numbers<[1], [0], [0], [1], [0, 0, 1, 1], [], []>} : vector<8x64xf32>, vector<64x128xf32>, vector<8x128xf32> -> vector<8x128xf32>
    %c0_34 = arith.constant 0 : index
    %c0_35 = arith.constant 0 : index
    %54 = vector.load %arg5[%c0_34, %c0_35] : memref<1x128xf32, #tpu.memory_space<vmem>>, vector<1x128xf32>
    %55 = vector.broadcast %54 : vector<1x128xf32> to vector<8x128xf32>
    %56 = arith.addf %53, %55 : vector<8x128xf32>
    %57 = arith.negf %56 : vector<8x128xf32>
    %58 = math.exp %57 : vector<8x128xf32>
    %cst_36 = arith.constant 1.000000e+00 : f32
    %59 = vector.broadcast %cst_36 : f32 to vector<8x128xf32>
    %60 = arith.addf %59, %58 : vector<8x128xf32>
    %61 = arith.divf %59, %60 : vector<8x128xf32>
    %c0_37 = arith.constant 0 : index
    %c0_38 = arith.constant 0 : index
    %62 = vector.load %arg6[%c0_37, %c0_38] : memref<8x128xf32, #tpu.memory_space<vmem>>, vector<8x128xf32>
    tpu.vector_store %arg6[%c0_37, %c0_38], %61 {strides = array<i32>} : memref<8x128xf32, #tpu.memory_space<vmem>>, vector<8x128xf32>,
    return
  }
  func.func @transform_0(%arg0: i32) -> (i32, i32) {
    %c0_i32 = arith.constant 0 : i32
    %c0_i32_0 = arith.constant 0 : i32
    return %arg0, %c0_i32 : i32, i32
  }
  func.func @transform_1(%arg0: i32) -> (i32, i32) {
    %c0_i32 = arith.constant 0 : i32
    %c0_i32_0 = arith.constant 0 : i32
    %c0_i32_1 = arith.constant 0 : i32
    return %c0_i32, %c0_i32_0 : i32, i32
  }
  func.func @transform_2(%arg0: i32) -> (i32, i32) {
    %c0_i32 = arith.constant 0 : i32
    %c0_i32_0 = arith.constant 0 : i32
    %c0_i32_1 = arith.constant 0 : i32
    return %c0_i32, %c0_i32_0 : i32, i32
  }
  func.func @transform_3(%arg0: i32) -> (i32, i32) {
    %c0_i32 = arith.constant 0 : i32
    %c0_i32_0 = arith.constant 0 : i32
    %c0_i32_1 = arith.constant 0 : i32
    return %c0_i32, %c0_i32_0 : i32, i32
  }
  func.func @transform_4(%arg0: i32) -> (i32, i32) {
    %c0_i32 = arith.constant 0 : i32
    %c0_i32_0 = arith.constant 0 : i32
    %c0_i32_1 = arith.constant 0 : i32
    return %c0_i32, %c0_i32_0 : i32, i32
  }
  func.func @transform_5(%arg0: i32) -> (i32, i32) {
    %c0_i32 = arith.constant 0 : i32
    %c0_i32_0 = arith.constant 0 : i32
    return %arg0, %c0_i32 : i32, i32
  }
}

</mosaic_0001>

<llo_original>
// kernel: tpu_custom_call.1
$region0: #{tpu_custom_call.1}
  #allocation0 [shape = 'u32[]', space=smem, size = 0x4, offset = 0x4, fixed_abs, tag = 'smem constant byte address 0x4 - core index']
  #allocation1 [shape = 'u32[144,128]{1,0:T(1,128)}', space=vmem, size = 0x12000, scoped, tag = 'internal scratch']
  %s0 = inlined_call_operand.vmem [shape: f32[128,8], index: 0, kind: input, shape index: {}]
  %s1 = inlined_call_operand.vmem [shape: f32[392,64], index: 1, kind: input, shape index: {}]
  %s2 = inlined_call_operand.vmem [shape: f32[8,64], index: 2, kind: input, shape index: {}]
  %s3 = inlined_call_operand.vmem [shape: f32[64,128], index: 3, kind: input, shape index: {}]
  %s4 = inlined_call_operand.vmem [shape: f32[1,128], index: 4, kind: input, shape index: {}]
  %s5 = inlined_call_operand.hbm [shape: f32[8,128], index: 5, kind: output, shape index: {}]
  %s6 = sld [smem:[#allocation0]]
  $region30: #{tpu_custom_call.1} parent=0
    _
  %s8 = ssub.s32 1, %s6
  %s9 = scalar_select 0, %s8, %s6
  $region1: #{tpu_custom_call.1} parent=0
    #allocation2 [shape = 'u8[4096]{0}', space=vmem, size = 0x1000, scoped, tag = 'output window, operand 0, single buffered']
    #allocation3 [shape = 's32[1]{0}', space=sflag, size = 0x4, scoped, tag = 'scoped memory for tpu_custom_call.1']
    %10 = vsyncpa [#allocation3], 0
    // Predicated region
    $region2: #{tpu_custom_call.1} parent=1 // pred_check
      _
    $region3: #{tpu_custom_call.1} parent=1 // pred_check_branch
      %12 = sbr.rel (0) target = $region5
    $region4: #{tpu_custom_call.1} parent=1 // pred_region
      _
    $region5: #{tpu_custom_call.1} parent=1 // pred_fallthru
      _
    // Predicated region
    $region6: #{tpu_custom_call.1} parent=1 // pred_check
      _
    $region7: #{tpu_custom_call.1} parent=1 // pred_check_branch
      %14 = sbr.rel (0) target = $region9
    $region8: #{tpu_custom_call.1} parent=1 // pred_region
      _
    $region9: #{tpu_custom_call.1} parent=1 // pred_fallthru
      _
    // Predicated region
    $region10: #{tpu_custom_call.1} parent=1 // pred_check
      _
    $region11: #{tpu_custom_call.1} parent=1 // pred_check_branch
      %16 = sbr.rel (0) target = $region13
    $region12: #{tpu_custom_call.1} parent=1 // pred_region
      _
    $region13: #{tpu_custom_call.1} parent=1 // pred_fallthru
      _
    // Predicated region
    $region14: #{tpu_custom_call.1} parent=1 // pred_check
      _
    $region15: #{tpu_custom_call.1} parent=1 // pred_check_branch
      %18 = sbr.rel (0) target = $region17
    $region16: #{tpu_custom_call.1} parent=1 // pred_region
      _
    $region17: #{tpu_custom_call.1} parent=1 // pred_fallthru
      _
    // Predicated region
    $region18: #{tpu_custom_call.1} parent=1 // pred_check
      _
    $region19: #{tpu_custom_call.1} parent=1 // pred_check_branch
      %20 = sbr.rel (0) target = $region21
    $region20: #{tpu_custom_call.1} parent=1 // pred_region
      _
    $region21: #{tpu_custom_call.1} parent=1 // pred_fallthru
      _
    %v21 = vld [vmem:[%s0] sm:$0xff]
    %v22 = vld [vmem:[%s0 + $0x8] sm:$0xff]
    %v23 = vld [vmem:[%s0 + $0x10] sm:$0xff]
    %v24 = vld [vmem:[%s0 + $0x18] sm:$0xff]
    %v25 = vld [vmem:[%s0 + $0x20] sm:$0xff]
    %v26 = vld [vmem:[%s0 + $0x28] sm:$0xff]
    %v27 = vld [vmem:[%s0 + $0x30] sm:$0xff]
    %v28 = vld [vmem:[%s0 + $0x38] sm:$0xff]
    %v29 = vld [vmem:[%s0 + $0x40] sm:$0xff]
    %v30 = vld [vmem:[%s0 + $0x48] sm:$0xff]
    %v31 = vld [vmem:[%s0 + $0x50] sm:$0xff]
    %v32 = vld [vmem:[%s0 + $0x58] sm:$0xff]
    %v33 = vld [vmem:[%s0 + $0x60] sm:$0xff]
    %v34 = vld [vmem:[%s0 + $0x68] sm:$0xff]
    %v35 = vld [vmem:[%s0 + $0x70] sm:$0xff]
    %v36 = vld [vmem:[%s0 + $0x78] sm:$0xff]
    %v37 = vld [vmem:[%s1] sm:$0xff]
    %v38 = vld [vmem:[%s2] sm:$0x1]
    %v39 = vlaneseq
    %v40 = vshrl.u32 %v39, 7
    %v41 = vsub.s32 0, %v40
    %v42 = vrot.slane %v38, %v41
    %vm43 = vcmask 64512
    %v45 = vsel %vm43, %v21, 0
    %v48 = vsel %vm43, %v22, 0
    %v51 = vsel %vm43, %v23, 0
    %v54 = vsel %vm43, %v24, 0
    %v57 = vsel %vm43, %v25, 0
    %v60 = vsel %vm43, %v26, 0
    %v63 = vsel %vm43, %v27, 0
    %v66 = vsel %vm43, %v28, 0
    %v69 = vsel %vm43, %v29, 0
    %v72 = vsel %vm43, %v30, 0
    %v75 = vsel %vm43, %v31, 0
    %v78 = vsel %vm43, %v32, 0
    %v81 = vsel %vm43, %v33, 0
    %v84 = vsel %vm43, %v34, 0
    %v87 = vsel %vm43, %v35, 0
    %v90 = vsel %vm43, %v36, 0
    %92 = vmatprep.subr.mxu0 0.0
    %93 = vmatpush1.msra.mxu0 0.0
    %94 = vmatprep.subr.mxu0 0.0
    %95 = vmatpush1.msra.mxu0 0.0
    %96 = vmatprep.subr.mxu0 0.0
    %97 = vmatpush1.msra.mxu0 0.0
    %98 = vmatprep.subr.mxu0 0.0
    %99 = vmatpush1.msra.mxu0 0.0
    %100 = vmatprep.subr.mxu0 0.0
    %101 = vmatpush1.msra.mxu0 0.0
    %102 = vmatprep.subr.mxu0 0.0
    %103 = vmatpush1.msra.mxu0 0.0
    %104 = vmatprep.subr.mxu0 0.0
    %105 = vmatpush1.msra.mxu0 0.0
    %106 = vmatprep.subr.mxu0 0.0
    %107 = vmatpush1.msra.mxu0 0.0
    %108 = vmatprep.subr.mxu0 0.0
    %109 = vmatpush1.msra.mxu0 0.0
    %110 = vmatprep.subr.mxu0 0.0
    %111 = vmatpush1.msra.mxu0 0.0
    %112 = vmatprep.subr.mxu0 0.0
    %113 = vmatpush1.msra.mxu0 0.0
    %114 = vmatprep.subr.mxu0 0.0
    %115 = vmatpush1.msra.mxu0 0.0
    %116 = vmatprep.subr.mxu0 0.0
    %117 = vmatpush1.msra.mxu0 0.0
    %118 = vmatprep.subr.mxu0 0.0
    %119 = vmatpush1.msra.mxu0 0.0
    %120 = vmatprep.subr.mxu0 0.0
    %121 = vmatpush1.msra.mxu0 0.0
    %122 = vmatprep.subr.mxu0 0.0
    %123 = vmatpush1.msra.mxu0 %v37
    %124 = vmatprep.subr.mxu0 0.0
    %125 = vmatpush2.msra.mxu0 0.0
    %126 = vmatprep.subr.mxu0 0.0
    %127 = vmatpush2.msra.mxu0 0.0
    %128 = vmatprep.subr.mxu0 0.0
    %129 = vmatpush2.msra.mxu0 0.0
    %130 = vmatprep.subr.mxu0 0.0
    %131 = vmatpush2.msra.mxu0 0.0
    %132 = vmatprep.subr.mxu0 0.0
    %133 = vmatpush2.msra.mxu0 0.0
    %134 = vmatprep.subr.mxu0 0.0
    %135 = vmatpush2.msra.mxu0 0.0
    %136 = vmatprep.subr.mxu0 0.0
    %137 = vmatpush2.msra.mxu0 0.0
    %138 = vmatprep.subr.mxu0 0.0
    %139 = vmatpush2.msra.mxu0 0.0
    %140 = vmatprep.subr.mxu0 0.0
    %141 = vmatpush2.msra.mxu0 0.0
    %142 = vmatprep.subr.mxu0 0.0
    %143 = vmatpush2.msra.mxu0 0.0
    %144 = vmatprep.subr.mxu0 0.0
    %145 = vmatpush2.msra.mxu0 0.0
    %146 = vmatprep.subr.mxu0 0.0
    %147 = vmatpush2.msra.mxu0 0.0
    %148 = vmatprep.subr.mxu0 0.0
    %149 = vmatpush2.msra.mxu0 0.0
    %150 = vmatprep.subr.mxu0 0.0
    %151 = vmatpush2.msra.mxu0 0.0
    %152 = vmatprep.subr.mxu0 0.0
    %153 = vmatpush2.msra.mxu0 0.0
    %154 = vmatprep.subr.mxu0 0.0
    %155 = vmatpush2.msra.mxu0 0.0
    %156 = vmatprep.mubr.f32.mxu0 0.0
    %157 = vmatmul.mubr.f32.gmra.mxu0 %v45
    %v158 = vpop.f32.mrf.mxu0
    %v159 = vadd.f32 %v42, %v158
    %v160 = vpop.f32.mrf.mxu0
    %161 = vmatprep.mubr.f32.mxu0 0.0
    %162 = vmatmul.mubr.f32.gmra.mxu0 %v48
    %v163 = vpop.f32.mrf.mxu0
    %v164 = vadd.f32 %v42, %v163
    %v165 = vpop.f32.mrf.mxu0
    %166 = vmatprep.mubr.f32.mxu0 0.0
    %167 = vmatmul.mubr.f32.gmra.mxu0 %v51
    %v168 = vpop.f32.mrf.mxu0
    %v169 = vadd.f32 %v42, %v168
    %v170 = vpop.f32.mrf.mxu0
    %171 = vmatprep.mubr.f32.mxu0 0.0
    %172 = vmatmul.mubr.f32.gmra.mxu0 %v54
    %v173 = vpop.f32.mrf.mxu0
    %v174 = vadd.f32 %v42, %v173
    %v175 = vpop.f32.mrf.mxu0
    %176 = vmatprep.mubr.f32.mxu0 0.0
    %177 = vmatmul.mubr.f32.gmra.mxu0 %v57
    %v178 = vpop.f32.mrf.mxu0
    %v179 = vadd.f32 %v42, %v178
    %v180 = vpop.f32.mrf.mxu0
    %181 = vmatprep.mubr.f32.mxu0 0.0
    %182 = vmatmul.mubr.f32.gmra.mxu0 %v60
    %v183 = vpop.f32.mrf.mxu0
    %v184 = vadd.f32 %v42, %v183
    %v185 = vpop.f32.mrf.mxu0
    %186 = vmatprep.mubr.f32.mxu0 0.0
    %187 = vmatmul.mubr.f32.gmra.mxu0 %v63
    %v188 = vpop.f32.mrf.mxu0
    %v189 = vadd.f32 %v42, %v188
    %v190 = vpop.f32.mrf.mxu0
    %191 = vmatprep.mubr.f32.mxu0 0.0
    %192 = vmatmul.mubr.f32.gmra.mxu0 %v66
    %v193 = vpop.f32.mrf.mxu0
    %v194 = vadd.f32 %v42, %v193
    %v195 = vpop.f32.mrf.mxu0
    %196 = vmatprep.mubr.f32.mxu0 0.0
    %197 = vmatmul.mubr.f32.gmra.mxu0 %v69
    %v198 = vpop.f32.mrf.mxu0
    %v199 = vadd.f32 %v42, %v198
    %v200 = vpop.f32.mrf.mxu0
    %201 = vmatprep.mubr.f32.mxu0 0.0
    %202 = vmatmul.mubr.f32.gmra.mxu0 %v72
    %v203 = vpop.f32.mrf.mxu0
    %v204 = vadd.f32 %v42, %v203
    %v205 = vpop.f32.mrf.mxu0
    %206 = vmatprep.mubr.f32.mxu0 0.0
    %207 = vmatmul.mubr.f32.gmra.mxu0 %v75
    %v208 = vpop.f32.mrf.mxu0
    %v209 = vadd.f32 %v42, %v208
    %v210 = vpop.f32.mrf.mxu0
    %211 = vmatprep.mubr.f32.mxu0 0.0
    %212 = vmatmul.mubr.f32.gmra.mxu0 %v78
    %v213 = vpop.f32.mrf.mxu0
    %v214 = vadd.f32 %v42, %v213
    %v215 = vpop.f32.mrf.mxu0
    %216 = vmatprep.mubr.f32.mxu0 0.0
    %217 = vmatmul.mubr.f32.gmra.mxu0 %v81
    %v218 = vpop.f32.mrf.mxu0
    %v219 = vadd.f32 %v42, %v218
    %v220 = vpop.f32.mrf.mxu0
    %221 = vmatprep.mubr.f32.mxu0 0.0
    %222 = vmatmul.mubr.f32.gmra.mxu0 %v84
    %v223 = vpop.f32.mrf.mxu0
    %v224 = vadd.f32 %v42, %v223
    %v225 = vpop.f32.mrf.mxu0
    %226 = vmatprep.mubr.f32.mxu0 0.0
    %227 = vmatmul.mubr.f32.gmra.mxu0 %v87
    %v228 = vpop.f32.mrf.mxu0
    %v229 = vadd.f32 %v42, %v228
    %v230 = vpop.f32.mrf.mxu0
    %231 = vmatprep.mubr.f32.mxu0 0.0
    %232 = vmatmul.mubr.f32.gmra.mxu0 %v90
    %v233 = vpop.f32.mrf.mxu0
    %v234 = vadd.f32 %v42, %v233
    %v235 = vpop.f32.mrf.mxu0
    %236 = vdwg.mxu0
    %v237 = vmax.f32 %v159, 0.0
    %v238 = vmax.f32 %v164, 0.0
    %v239 = vmax.f32 %v169, 0.0
    %v240 = vmax.f32 %v174, 0.0
    %v241 = vmax.f32 %v179, 0.0
    %v242 = vmax.f32 %v184, 0.0
    %v243 = vmax.f32 %v189, 0.0
    %v244 = vmax.f32 %v194, 0.0
    %v245 = vmax.f32 %v199, 0.0
    %v246 = vmax.f32 %v204, 0.0
    %v247 = vmax.f32 %v209, 0.0
    %v248 = vmax.f32 %v214, 0.0
    %v249 = vmax.f32 %v219, 0.0
    %v250 = vmax.f32 %v224, 0.0
    %v251 = vmax.f32 %v229, 0.0
    %v252 = vmax.f32 %v234, 0.0
    %v253 = vld [vmem:[%s1 + $0x8] sm:$0xff]
    %v254 = vld [vmem:[%s1 + $0x10] sm:$0xff]
    %v255 = vld [vmem:[%s1 + $0x18] sm:$0xff]
    %v256 = vld [vmem:[%s1 + $0x20] sm:$0xff]
    %v257 = vld [vmem:[%s1 + $0x28] sm:$0xff]
    %v258 = vld [vmem:[%s1 + $0x30] sm:$0xff]
    %v259 = vld [vmem:[%s1 + $0x38] sm:$0xff]
    %v260 = vld [vmem:[%s1 + $0x40] sm:$0xff]
    %v261 = vld [vmem:[%s2 + $0x1] sm:$0x1]
    %v262 = vlaneseq
    %v263 = vshrl.u32 %v262, 7
    %v264 = vsub.s32 0, %v263
    %v265 = vrot.slane %v261, %v264
    %vm266 = vcmask 523264
    %v268 = vsel %vm266, %v237, 0
    %v271 = vsel %vm266, %v238, 0
    %v274 = vsel %vm266, %v239, 0
    %v277 = vsel %vm266, %v240, 0
    %v280 = vsel %vm266, %v241, 0
    %v283 = vsel %vm266, %v242, 0
    %v286 = vsel %vm266, %v243, 0
    %v289 = vsel %vm266, %v244, 0
    %v292 = vsel %vm266, %v245, 0
    %v295 = vsel %vm266, %v246, 0
    %v298 = vsel %vm266, %v247, 0
    %v301 = vsel %vm266, %v248, 0
    %v304 = vsel %vm266, %v249, 0
    %v307 = vsel %vm266, %v250, 0
    %v310 = vsel %vm266, %v251, 0
    %v313 = vsel %vm266, %v252, 0
    %315 = vmatprep.subr.mxu0 0.0
    %316 = vmatpush1.msra.mxu0 0.0
    %317 = vmatprep.subr.mxu0 0.0
    %318 = vmatpush1.msra.mxu0 0.0
    %319 = vmatprep.subr.mxu0 0.0
    %320 = vmatpush1.msra.mxu0 0.0
    %321 = vmatprep.subr.mxu0 0.0
    %322 = vmatpush1.msra.mxu0 0.0
    %323 = vmatprep.subr.mxu0 0.0
    %324 = vmatpush1.msra.mxu0 0.0
    %325 = vmatprep.subr.mxu0 0.0
    %326 = vmatpush1.msra.mxu0 0.0
    %327 = vmatprep.subr.mxu0 0.0
    %328 = vmatpush1.msra.mxu0 0.0
    %329 = vmatprep.subr.mxu0 0.0
    %330 = vmatpush1.msra.mxu0 0.0
    %331 = vmatprep.subr.mxu0 0.0
    %332 = vmatpush1.msra.mxu0 %v260
    %333 = vmatprep.subr.mxu0 0.0
    %334 = vmatpush1.msra.mxu0 %v259
    %335 = vmatprep.subr.mxu0 0.0
    %336 = vmatpush1.msra.mxu0 %v258
    %337 = vmatprep.subr.mxu0 0.0
    %338 = vmatpush1.msra.mxu0 %v257
    %339 = vmatprep.subr.mxu0 0.0
    %340 = vmatpush1.msra.mxu0 %v256
    %341 = vmatprep.subr.mxu0 0.0
    %342 = vmatpush1.msra.mxu0 %v255
    %343 = vmatprep.subr.mxu0 0.0
    %344 = vmatpush1.msra.mxu0 %v254
    %345 = vmatprep.subr.mxu0 0.0
    %346 = vmatpush1.msra.mxu0 %v253
    %347 = vmatprep.subr.mxu0 0.0
    %348 = vmatpush2.msra.mxu0 0.0
    %349 = vmatprep.subr.mxu0 0.0
    %350 = vmatpush2.msra.mxu0 0.0
    %351 = vmatprep.subr.mxu0 0.0
    %352 = vmatpush2.msra.mxu0 0.0
    %353 = vmatprep.subr.mxu0 0.0
    %354 = vmatpush2.msra.mxu0 0.0
    %355 = vmatprep.subr.mxu0 0.0
    %356 = vmatpush2.msra.mxu0 0.0
    %357 = vmatprep.subr.mxu0 0.0
    %358 = vmatpush2.msra.mxu0 0.0
    %359 = vmatprep.subr.mxu0 0.0
    %360 = vmatpush2.msra.mxu0 0.0
    %361 = vmatprep.subr.mxu0 0.0
    %362 = vmatpush2.msra.mxu0 0.0
    %363 = vmatprep.subr.mxu0 0.0
    %364 = vmatpush2.msra.mxu0 0.0
    %365 = vmatprep.subr.mxu0 0.0
    %366 = vmatpush2.msra.mxu0 0.0
    %367 = vmatprep.subr.mxu0 0.0
    %368 = vmatpush2.msra.mxu0 0.0
    %369 = vmatprep.subr.mxu0 0.0
    %370 = vmatpush2.msra.mxu0 0.0
    %371 = vmatprep.subr.mxu0 0.0
    %372 = vmatpush2.msra.mxu0 0.0
    %373 = vmatprep.subr.mxu0 0.0
    %374 = vmatpush2.msra.mxu0 0.0
    %375 = vmatprep.subr.mxu0 0.0
    %376 = vmatpush2.msra.mxu0 0.0
    %377 = vmatprep.subr.mxu0 0.0
    %378 = vmatpush2.msra.mxu0 0.0
    %379 = vmatprep.mubr.f32.mxu0 0.0
    %380 = vmatmul.mubr.f32.gmra.mxu0 %v268
    %v381 = vpop.f32.mrf.mxu0
    %v382 = vadd.f32 %v265, %v381
    %v383 = vpop.f32.mrf.mxu0
    %384 = vmatprep.mubr.f32.mxu0 0.0
    %385 = vmatmul.mubr.f32.gmra.mxu0 %v271
    %v386 = vpop.f32.mrf.mxu0
    %v387 = vadd.f32 %v265, %v386
    %v388 = vpop.f32.mrf.mxu0
    %389 = vmatprep.mubr.f32.mxu0 0.0
    %390 = vmatmul.mubr.f32.gmra.mxu0 %v274
    %v391 = vpop.f32.mrf.mxu0
    %v392 = vadd.f32 %v265, %v391
    %v393 = vpop.f32.mrf.mxu0
    %394 = vmatprep.mubr.f32.mxu0 0.0
    %395 = vmatmul.mubr.f32.gmra.mxu0 %v277
    %v396 = vpop.f32.mrf.mxu0
    %v397 = vadd.f32 %v265, %v396
    %v398 = vpop.f32.mrf.mxu0
    %399 = vmatprep.mubr.f32.mxu0 0.0
    %400 = vmatmul.mubr.f32.gmra.mxu0 %v280
    %v401 = vpop.f32.mrf.mxu0
    %v402 = vadd.f32 %v265, %v401
    %v403 = vpop.f32.mrf.mxu0
    %404 = vmatprep.mubr.f32.mxu0 0.0
    %405 = vmatmul.mubr.f32.gmra.mxu0 %v283
    %v406 = vpop.f32.mrf.mxu0
    %v407 = vadd.f32 %v265, %v406
    %v408 = vpop.f32.mrf.mxu0
    %409 = vmatprep.mubr.f32.mxu0 0.0
    %410 = vmatmul.mubr.f32.gmra.mxu0 %v286
    %v411 = vpop.f32.mrf.mxu0
    %v412 = vadd.f32 %v265, %v411
    %v413 = vpop.f32.mrf.mxu0
    %414 = vmatprep.mubr.f32.mxu0 0.0
    %415 = vmatmul.mubr.f32.gmra.mxu0 %v289
    %v416 = vpop.f32.mrf.mxu0
    %v417 = vadd.f32 %v265, %v416
    %v418 = vpop.f32.mrf.mxu0
    %419 = vmatprep.mubr.f32.mxu0 0.0
    %420 = vmatmul.mubr.f32.gmra.mxu0 %v292
    %v421 = vpop.f32.mrf.mxu0
    %v422 = vadd.f32 %v265, %v421
    %v423 = vpop.f32.mrf.mxu0
    %424 = vmatprep.mubr.f32.mxu0 0.0
    %425 = vmatmul.mubr.f32.gmra.mxu0 %v295
    %v426 = vpop.f32.mrf.mxu0
    %v427 = vadd.f32 %v265, %v426
    %v428 = vpop.f32.mrf.mxu0
    %429 = vmatprep.mubr.f32.mxu0 0.0
    %430 = vmatmul.mubr.f32.gmra.mxu0 %v298
    %v431 = vpop.f32.mrf.mxu0
    %v432 = vadd.f32 %v265, %v431
    %v433 = vpop.f32.mrf.mxu0
    %434 = vmatprep.mubr.f32.mxu0 0.0
    %435 = vmatmul.mubr.f32.gmra.mxu0 %v301
    %v436 = vpop.f32.mrf.mxu0
    %v437 = vadd.f32 %v265, %v436
    %v438 = vpop.f32.mrf.mxu0
    %439 = vmatprep.mubr.f32.mxu0 0.0
    %440 = vmatmul.mubr.f32.gmra.mxu0 %v304
    %v441 = vpop.f32.mrf.mxu0
    %v442 = vadd.f32 %v265, %v441
    %v443 = vpop.f32.mrf.mxu0
    %444 = vmatprep.mubr.f32.mxu0 0.0
    %445 = vmatmul.mubr.f32.gmra.mxu0 %v307
    %v446 = vpop.f32.mrf.mxu0
    %v447 = vadd.f32 %v265, %v446
    %v448 = vpop.f32.mrf.mxu0
    %449 = vmatprep.mubr.f32.mxu0 0.0
    %450 = vmatmul.mubr.f32.gmra.mxu0 %v310
    %v451 = vpop.f32.mrf.mxu0
    %v452 = vadd.f32 %v265, %v451
    %v453 = vpop.f32.mrf.mxu0
    %454 = vmatprep.mubr.f32.mxu0 0.0
    %455 = vmatmul.mubr.f32.gmra.mxu0 %v313
    %v456 = vpop.f32.mrf.mxu0
    %v457 = vadd.f32 %v265, %v456
    %v458 = vpop.f32.mrf.mxu0
    %459 = vdwg.mxu0
    %v460 = vmax.f32 %v382, 0.0
    %v461 = vmax.f32 %v387, 0.0
    %v462 = vmax.f32 %v392, 0.0
    %v463 = vmax.f32 %v397, 0.0
    %v464 = vmax.f32 %v402, 0.0
    %v465 = vmax.f32 %v407, 0.0
    %v466 = vmax.f32 %v412, 0.0
    %v467 = vmax.f32 %v417, 0.0
    %v468 = vmax.f32 %v422, 0.0
    %v469 = vmax.f32 %v427, 0.0
    %v470 = vmax.f32 %v432, 0.0
    %v471 = vmax.f32 %v437, 0.0
    %v472 = vmax.f32 %v442, 0.0
    %v473 = vmax.f32 %v447, 0.0
    %v474 = vmax.f32 %v452, 0.0
    %v475 = vmax.f32 %v457, 0.0
    %v476 = vld [vmem:[%s1 + $0x48] sm:$0xff]
    %v477 = vld [vmem:[%s1 + $0x50] sm:$0xff]
    %v478 = vld [vmem:[%s1 + $0x58] sm:$0xff]
    %v479 = vld [vmem:[%s1 + $0x60] sm:$0xff]
    %v480 = vld [vmem:[%s1 + $0x68] sm:$0xff]
    %v481 = vld [vmem:[%s1 + $0x70] sm:$0xff]
    %v482 = vld [vmem:[%s1 + $0x78] sm:$0xff]
    %v483 = vld [vmem:[%s1 + $0x80] sm:$0xff]
    %v484 = vld [vmem:[%s2 + $0x2] sm:$0x1]
    %v485 = vlaneseq
    %v486 = vshrl.u32 %v485, 7
    %v487 = vsub.s32 0, %v486
    %v488 = vrot.slane %v484, %v487
    %v490 = vsel %vm266, %v460, 0
    %v493 = vsel %vm266, %v461, 0
    %v496 = vsel %vm266, %v462, 0
    %v499 = vsel %vm266, %v463, 0
    %v502 = vsel %vm266, %v464, 0
    %v505 = vsel %vm266, %v465, 0
    %v508 = vsel %vm266, %v466, 0
    %v511 = vsel %vm266, %v467, 0
    %v514 = vsel %vm266, %v468, 0
    %v517 = vsel %vm266, %v469, 0
    %v520 = vsel %vm266, %v470, 0
    %v523 = vsel %vm266, %v471, 0
    %v526 = vsel %vm266, %v472, 0
    %v529 = vsel %vm266, %v473, 0
    %v532 = vsel %vm266, %v474, 0
    %v535 = vsel %vm266, %v475, 0
    %537 = vmatprep.subr.mxu0 0.0
    %538 = vmatpush1.msra.mxu0 0.0
    %539 = vmatprep.subr.mxu0 0.0
    %540 = vmatpush1.msra.mxu0 0.0
    %541 = vmatprep.subr.mxu0 0.0
    %542 = vmatpush1.msra.mxu0 0.0
    %543 = vmatprep.subr.mxu0 0.0
    %544 = vmatpush1.msra.mxu0 0.0
    %545 = vmatprep.subr.mxu0 0.0
    %546 = vmatpush1.msra.mxu0 0.0
    %547 = vmatprep.subr.mxu0 0.0
    %548 = vmatpush1.msra.mxu0 0.0
    %549 = vmatprep.subr.mxu0 0.0
    %550 = vmatpush1.msra.mxu0 0.0
    %551 = vmatprep.subr.mxu0 0.0
    %552 = vmatpush1.msra.mxu0 0.0
    %553 = vmatprep.subr.mxu0 0.0
    %554 = vmatpush1.msra.mxu0 %v483
    %555 = vmatprep.subr.mxu0 0.0
    %556 = vmatpush1.msra.mxu0 %v482
    %557 = vmatprep.subr.mxu0 0.0
    %558 = vmatpush1.msra.mxu0 %v481
    %559 = vmatprep.subr.mxu0 0.0
    %560 = vmatpush1.msra.mxu0 %v480
    %561 = vmatprep.subr.mxu0 0.0
    %562 = vmatpush1.msra.mxu0 %v479
    %563 = vmatprep.subr.mxu0 0.0
    %564 = vmatpush1.msra.mxu0 %v478
    %565 = vmatprep.subr.mxu0 0.0
    %566 = vmatpush1.msra.mxu0 %v477
    %567 = vmatprep.subr.mxu0 0.0
    %568 = vmatpush1.msra.mxu0 %v476
    %569 = vmatprep.subr.mxu0 0.0
    %570 = vmatpush2.msra.mxu0 0.0
    %571 = vmatprep.subr.mxu0 0.0
    %572 = vmatpush2.msra.mxu0 0.0
    %573 = vmatprep.subr.mxu0 0.0
    %574 = vmatpush2.msra.mxu0 0.0
    %575 = vmatprep.subr.mxu0 0.0
    %576 = vmatpush2.msra.mxu0 0.0
    %577 = vmatprep.subr.mxu0 0.0
    %578 = vmatpush2.msra.mxu0 0.0
    %579 = vmatprep.subr.mxu0 0.0
    %580 = vmatpush2.msra.mxu0 0.0
    %581 = vmatprep.subr.mxu0 0.0
    %582 = vmatpush2.msra.mxu0 0.0
    %583 = vmatprep.subr.mxu0 0.0
    %584 = vmatpush2.msra.mxu0 0.0
    %585 = vmatprep.subr.mxu0 0.0
    %586 = vmatpush2.msra.mxu0 0.0
    %587 = vmatprep.subr.mxu0 0.0
    %588 = vmatpush2.msra.mxu0 0.0
    %589 = vmatprep.subr.mxu0 0.0
    %590 = vmatpush2.msra.mxu0 0.0
    %591 = vmatprep.subr.mxu0 0.0
    %592 = vmatpush2.msra.mxu0 0.0
    %593 = vmatprep.subr.mxu0 0.0
    %594 = vmatpush2.msra.mxu0 0.0
    %595 = vmatprep.subr.mxu0 0.0
    %596 = vmatpush2.msra.mxu0 0.0
    %597 = vmatprep.subr.mxu0 0.0
    %598 = vmatpush2.msra.mxu0 0.0
    %599 = vmatprep.subr.mxu0 0.0
    %600 = vmatpush2.msra.mxu0 0.0
    %601 = vmatprep.mubr.f32.mxu0 0.0
    %602 = vmatmul.mubr.f32.gmra.mxu0 %v490
    %v603 = vpop.f32.mrf.mxu0
    %v604 = vadd.f32 %v488, %v603
    %v605 = vpop.f32.mrf.mxu0
    %606 = vmatprep.mubr.f32.mxu0 0.0
    %607 = vmatmul.mubr.f32.gmra.mxu0 %v493
    %v608 = vpop.f32.mrf.mxu0
    %v609 = vadd.f32 %v488, %v608
    %v610 = vpop.f32.mrf.mxu0
    %611 = vmatprep.mubr.f32.mxu0 0.0
    %612 = vmatmul.mubr.f32.gmra.mxu0 %v496
    %v613 = vpop.f32.mrf.mxu0
    %v614 = vadd.f32 %v488, %v613
    %v615 = vpop.f32.mrf.mxu0
    %616 = vmatprep.mubr.f32.mxu0 0.0
    %617 = vmatmul.mubr.f32.gmra.mxu0 %v499
    %v618 = vpop.f32.mrf.mxu0
    %v619 = vadd.f32 %v488, %v618
    %v620 = vpop.f32.mrf.mxu0
    %621 = vmatprep.mubr.f32.mxu0 0.0
    %622 = vmatmul.mubr.f32.gmra.mxu0 %v502
    %v623 = vpop.f32.mrf.mxu0
    %v624 = vadd.f32 %v488, %v623
    %v625 = vpop.f32.mrf.mxu0
    %626 = vmatprep.mubr.f32.mxu0 0.0
    %627 = vmatmul.mubr.f32.gmra.mxu0 %v505
    %v628 = vpop.f32.mrf.mxu0
    %v629 = vadd.f32 %v488, %v628
    %v630 = vpop.f32.mrf.mxu0
    %631 = vmatprep.mubr.f32.mxu0 0.0
    %632 = vmatmul.mubr.f32.gmra.mxu0 %v508
    %v633 = vpop.f32.mrf.mxu0
    %v634 = vadd.f32 %v488, %v633
    %v635 = vpop.f32.mrf.mxu0
    %636 = vmatprep.mubr.f32.mxu0 0.0
    %637 = vmatmul.mubr.f32.gmra.mxu0 %v511
    %v638 = vpop.f32.mrf.mxu0
    %v639 = vadd.f32 %v488, %v638
    %v640 = vpop.f32.mrf.mxu0
    %641 = vmatprep.mubr.f32.mxu0 0.0
    %642 = vmatmul.mubr.f32.gmra.mxu0 %v514
    %v643 = vpop.f32.mrf.mxu0
    %v644 = vadd.f32 %v488, %v643
    %v645 = vpop.f32.mrf.mxu0
    %646 = vmatprep.mubr.f32.mxu0 0.0
    %647 = vmatmul.mubr.f32.gmra.mxu0 %v517
    %v648 = vpop.f32.mrf.mxu0
    %v649 = vadd.f32 %v488, %v648
    %v650 = vpop.f32.mrf.mxu0
    %651 = vmatprep.mubr.f32.mxu0 0.0
    %652 = vmatmul.mubr.f32.gmra.mxu0 %v520
    %v653 = vpop.f32.mrf.mxu0
    %v654 = vadd.f32 %v488, %v653
    %v655 = vpop.f32.mrf.mxu0
    %656 = vmatprep.mubr.f32.mxu0 0.0
    %657 = vmatmul.mubr.f32.gmra.mxu0 %v523
    %v658 = vpop.f32.mrf.mxu0
    %v659 = vadd.f32 %v488, %v658
    %v660 = vpop.f32.mrf.mxu0
    %661 = vmatprep.mubr.f32.mxu0 0.0
    %662 = vmatmul.mubr.f32.gmra.mxu0 %v526
    %v663 = vpop.f32.mrf.mxu0
    %v664 = vadd.f32 %v488, %v663
    %v665 = vpop.f32.mrf.mxu0
    %666 = vmatprep.mubr.f32.mxu0 0.0
    %667 = vmatmul.mubr.f32.gmra.mxu0 %v529
    %v668 = vpop.f32.mrf.mxu0
    %v669 = vadd.f32 %v488, %v668
    %v670 = vpop.f32.mrf.mxu0
    %671 = vmatprep.mubr.f32.mxu0 0.0
    %672 = vmatmul.mubr.f32.gmra.mxu0 %v532
    %v673 = vpop.f32.mrf.mxu0
    %v674 = vadd.f32 %v488, %v673
    %v675 = vpop.f32.mrf.mxu0
    %676 = vmatprep.mubr.f32.mxu0 0.0
    %677 = vmatmul.mubr.f32.gmra.mxu0 %v535
    %v678 = vpop.f32.mrf.mxu0
    %v679 = vadd.f32 %v488, %v678
    %v680 = vpop.f32.mrf.mxu0
    %681 = vdwg.mxu0
    %v682 = vmax.f32 %v604, 0.0
    %v683 = vmax.f32 %v609, 0.0
    %v684 = vmax.f32 %v614, 0.0
    %v685 = vmax.f32 %v619, 0.0
    %v686 = vmax.f32 %v624, 0.0
    %v687 = vmax.f32 %v629, 0.0
    %v688 = vmax.f32 %v634, 0.0
    %v689 = vmax.f32 %v639, 0.0
    %v690 = vmax.f32 %v644, 0.0
    %v691 = vmax.f32 %v649, 0.0
    %v692 = vmax.f32 %v654, 0.0
    %v693 = vmax.f32 %v659, 0.0
    %v694 = vmax.f32 %v664, 0.0
    %v695 = vmax.f32 %v669, 0.0
    %v696 = vmax.f32 %v674, 0.0
    %v697 = vmax.f32 %v679, 0.0
    %v698 = vld [vmem:[%s1 + $0x88] sm:$0xff]
    %v699 = vld [vmem:[%s1 + $0x90] sm:$0xff]
    %v700 = vld [vmem:[%s1 + $0x98] sm:$0xff]
    %v701 = vld [vmem:[%s1 + $0xa0] sm:$0xff]
    %v702 = vld [vmem:[%s1 + $0xa8] sm:$0xff]
    %v703 = vld [vmem:[%s1 + $0xb0] sm:$0xff]
    %v704 = vld [vmem:[%s1 + $0xb8] sm:$0xff]
    %v705 = vld [vmem:[%s1 + $0xc0] sm:$0xff]
    %v706 = vld [vmem:[%s2 + $0x3] sm:$0x1]
    %v707 = vlaneseq
    %v708 = vshrl.u32 %v707, 7
    %v709 = vsub.s32 0, %v708
    %v710 = vrot.slane %v706, %v709
    %v712 = vsel %vm266, %v682, 0
    %v715 = vsel %vm266, %v683, 0
    %v718 = vsel %vm266, %v684, 0
    %v721 = vsel %vm266, %v685, 0
    %v724 = vsel %vm266, %v686, 0
    %v727 = vsel %vm266, %v687, 0
    %v730 = vsel %vm266, %v688, 0
    %v733 = vsel %vm266, %v689, 0
    %v736 = vsel %vm266, %v690, 0
    %v739 = vsel %vm266, %v691, 0
    %v742 = vsel %vm266, %v692, 0
    %v745 = vsel %vm266, %v693, 0
    %v748 = vsel %vm266, %v694, 0
    %v751 = vsel %vm266, %v695, 0
    %v754 = vsel %vm266, %v696, 0
    %v757 = vsel %vm266, %v697, 0
    %759 = vmatprep.subr.mxu0 0.0
    %760 = vmatpush1.msra.mxu0 0.0
    %761 = vmatprep.subr.mxu0 0.0
    %762 = vmatpush1.msra.mxu0 0.0
    %763 = vmatprep.subr.mxu0 0.0
    %764 = vmatpush1.msra.mxu0 0.0
    %765 = vmatprep.subr.mxu0 0.0
    %766 = vmatpush1.msra.mxu0 0.0
    %767 = vmatprep.subr.mxu0 0.0
    %768 = vmatpush1.msra.mxu0 0.0
    %769 = vmatprep.subr.mxu0 0.0
    %770 = vmatpush1.msra.mxu0 0.0
    %771 = vmatprep.subr.mxu0 0.0
    %772 = vmatpush1.msra.mxu0 0.0
    %773 = vmatprep.subr.mxu0 0.0
    %774 = vmatpush1.msra.mxu0 0.0
    %775 = vmatprep.subr.mxu0 0.0
    %776 = vmatpush1.msra.mxu0 %v705
    %777 = vmatprep.subr.mxu0 0.0
    %778 = vmatpush1.msra.mxu0 %v704
    %779 = vmatprep.subr.mxu0 0.0
    %780 = vmatpush1.msra.mxu0 %v703
    %781 = vmatprep.subr.mxu0 0.0
    %782 = vmatpush1.msra.mxu0 %v702
    %783 = vmatprep.subr.mxu0 0.0
    %784 = vmatpush1.msra.mxu0 %v701
    %785 = vmatprep.subr.mxu0 0.0
    %786 = vmatpush1.msra.mxu0 %v700
    %787 = vmatprep.subr.mxu0 0.0
    %788 = vmatpush1.msra.mxu0 %v699
    %789 = vmatprep.subr.mxu0 0.0
    %790 = vmatpush1.msra.mxu0 %v698
    %791 = vmatprep.subr.mxu0 0.0
    %792 = vmatpush2.msra.mxu0 0.0
    %793 = vmatprep.subr.mxu0 0.0
    %794 = vmatpush2.msra.mxu0 0.0
    %795 = vmatprep.subr.mxu0 0.0
    %796 = vmatpush2.msra.mxu0 0.0
    %797 = vmatprep.subr.mxu0 0.0
    %798 = vmatpush2.msra.mxu0 0.0
    %799 = vmatprep.subr.mxu0 0.0
    %800 = vmatpush2.msra.mxu0 0.0
    %801 = vmatprep.subr.mxu0 0.0
    %802 = vmatpush2.msra.mxu0 0.0
    %803 = vmatprep.subr.mxu0 0.0
    %804 = vmatpush2.msra.mxu0 0.0
    %805 = vmatprep.subr.mxu0 0.0
    %806 = vmatpush2.msra.mxu0 0.0
    %807 = vmatprep.subr.mxu0 0.0
    %808 = vmatpush2.msra.mxu0 0.0
    %809 = vmatprep.subr.mxu0 0.0
    %810 = vmatpush2.msra.mxu0 0.0
    %811 = vmatprep.subr.mxu0 0.0
    %812 = vmatpush2.msra.mxu0 0.0
    %813 = vmatprep.subr.mxu0 0.0
    %814 = vmatpush2.msra.mxu0 0.0
    %815 = vmatprep.subr.mxu0 0.0
    %816 = vmatpush2.msra.mxu0 0.0
    %817 = vmatprep.subr.mxu0 0.0
    %818 = vmatpush2.msra.mxu0 0.0
    %819 = vmatprep.subr.mxu0 0.0
    %820 = vmatpush2.msra.mxu0 0.0
    %821 = vmatprep.subr.mxu0 0.0
    %822 = vmatpush2.msra.mxu0 0.0
    %823 = vmatprep.mubr.f32.mxu0 0.0
    %824 = vmatmul.mubr.f32.gmra.mxu0 %v712
    %v825 = vpop.f32.mrf.mxu0
    %v826 = vadd.f32 %v710, %v825
    %v827 = vpop.f32.mrf.mxu0
    %828 = vmatprep.mubr.f32.mxu0 0.0
    %829 = vmatmul.mubr.f32.gmra.mxu0 %v715
    %v830 = vpop.f32.mrf.mxu0
    %v831 = vadd.f32 %v710, %v830
    %v832 = vpop.f32.mrf.mxu0
    %833 = vmatprep.mubr.f32.mxu0 0.0
    %834 = vmatmul.mubr.f32.gmra.mxu0 %v718
    %v835 = vpop.f32.mrf.mxu0
    %v836 = vadd.f32 %v710, %v835
    %v837 = vpop.f32.mrf.mxu0
    %838 = vmatprep.mubr.f32.mxu0 0.0
    %839 = vmatmul.mubr.f32.gmra.mxu0 %v721
    %v840 = vpop.f32.mrf.mxu0
    %v841 = vadd.f32 %v710, %v840
    %v842 = vpop.f32.mrf.mxu0
    %843 = vmatprep.mubr.f32.mxu0 0.0
    %844 = vmatmul.mubr.f32.gmra.mxu0 %v724
    %v845 = vpop.f32.mrf.mxu0
    %v846 = vadd.f32 %v710, %v845
    %v847 = vpop.f32.mrf.mxu0
    %848 = vmatprep.mubr.f32.mxu0 0.0
    %849 = vmatmul.mubr.f32.gmra.mxu0 %v727
    %v850 = vpop.f32.mrf.mxu0
    %v851 = vadd.f32 %v710, %v850
    %v852 = vpop.f32.mrf.mxu0
    %853 = vmatprep.mubr.f32.mxu0 0.0
    %854 = vmatmul.mubr.f32.gmra.mxu0 %v730
    %v855 = vpop.f32.mrf.mxu0
    %v856 = vadd.f32 %v710, %v855
    %v857 = vpop.f32.mrf.mxu0
    %858 = vmatprep.mubr.f32.mxu0 0.0
    %859 = vmatmul.mubr.f32.gmra.mxu0 %v733
    %v860 = vpop.f32.mrf.mxu0
    %v861 = vadd.f32 %v710, %v860
    %v862 = vpop.f32.mrf.mxu0
    %863 = vmatprep.mubr.f32.mxu0 0.0
    %864 = vmatmul.mubr.f32.gmra.mxu0 %v736
    %v865 = vpop.f32.mrf.mxu0
    %v866 = vadd.f32 %v710, %v865
    %v867 = vpop.f32.mrf.mxu0
    %868 = vmatprep.mubr.f32.mxu0 0.0
    %869 = vmatmul.mubr.f32.gmra.mxu0 %v739
    %v870 = vpop.f32.mrf.mxu0
    %v871 = vadd.f32 %v710, %v870
    %v872 = vpop.f32.mrf.mxu0
    %873 = vmatprep.mubr.f32.mxu0 0.0
    %874 = vmatmul.mubr.f32.gmra.mxu0 %v742
    %v875 = vpop.f32.mrf.mxu0
    %v876 = vadd.f32 %v710, %v875
    %v877 = vpop.f32.mrf.mxu0
    %878 = vmatprep.mubr.f32.mxu0 0.0
    %879 = vmatmul.mubr.f32.gmra.mxu0 %v745
    %v880 = vpop.f32.mrf.mxu0
    %v881 = vadd.f32 %v710, %v880
    %v882 = vpop.f32.mrf.mxu0
    %883 = vmatprep.mubr.f32.mxu0 0.0
    %884 = vmatmul.mubr.f32.gmra.mxu0 %v748
    %v885 = vpop.f32.mrf.mxu0
    %v886 = vadd.f32 %v710, %v885
    %v887 = vpop.f32.mrf.mxu0
    %888 = vmatprep.mubr.f32.mxu0 0.0
    %889 = vmatmul.mubr.f32.gmra.mxu0 %v751
    %v890 = vpop.f32.mrf.mxu0
    %v891 = vadd.f32 %v710, %v890
    %v892 = vpop.f32.mrf.mxu0
    %893 = vmatprep.mubr.f32.mxu0 0.0
    %894 = vmatmul.mubr.f32.gmra.mxu0 %v754
    %v895 = vpop.f32.mrf.mxu0
    %v896 = vadd.f32 %v710, %v895
    %v897 = vpop.f32.mrf.mxu0
    %898 = vmatprep.mubr.f32.mxu0 0.0
    %899 = vmatmul.mubr.f32.gmra.mxu0 %v757
    %v900 = vpop.f32.mrf.mxu0
    %v901 = vadd.f32 %v710, %v900
    %v902 = vpop.f32.mrf.mxu0
    %903 = vdwg.mxu0
    %v904 = vmax.f32 %v826, 0.0
    %v905 = vmax.f32 %v831, 0.0
    %v906 = vmax.f32 %v836, 0.0
    %v907 = vmax.f32 %v841, 0.0
    %v908 = vmax.f32 %v846, 0.0
    %v909 = vmax.f32 %v851, 0.0
    %v910 = vmax.f32 %v856, 0.0
    %v911 = vmax.f32 %v861, 0.0
    %v912 = vmax.f32 %v866, 0.0
    %v913 = vmax.f32 %v871, 0.0
    %v914 = vmax.f32 %v876, 0.0
    %v915 = vmax.f32 %v881, 0.0
    %v916 = vmax.f32 %v886, 0.0
    %v917 = vmax.f32 %v891, 0.0
    %v918 = vmax.f32 %v896, 0.0
    %v919 = vmax.f32 %v901, 0.0
    %v920 = vsel %vm266, %v904, -inf
    %v921 = vsel %vm266, %v905, -inf
    %v922 = vmax.f32 %v920, %v921
    %v923 = vrot.slane %v922, 4
    %v924 = vmax.f32 %v922, %v923
    %v925 = vrot.slane %v924, 2
    %v926 = vmax.f32 %v924, %v925
    %v927 = vrot.slane %v926, 1
    %v928 = vmax.f32 %v926, %v927
    %v929 = vsel %vm266, %v906, -inf
    %v930 = vsel %vm266, %v907, -inf
    %v931 = vmax.f32 %v929, %v930
    %v932 = vrot.slane %v931, 4
    %v933 = vmax.f32 %v931, %v932
    %v934 = vrot.slane %v933, 2
    %v935 = vmax.f32 %v933, %v934
    %v936 = vrot.slane %v935, 1
    %v937 = vmax.f32 %v935, %v936
    %v938 = vsel %vm266, %v908, -inf
    %v939 = vsel %vm266, %v909, -inf
    %v940 = vmax.f32 %v938, %v939
    %v941 = vrot.slane %v940, 4
    %v942 = vmax.f32 %v940, %v941
    %v943 = vrot.slane %v942, 2
    %v944 = vmax.f32 %v942, %v943
    %v945 = vrot.slane %v944, 1
    %v946 = vmax.f32 %v944, %v945
    %v947 = vsel %vm266, %v910, -inf
    %v948 = vsel %vm266, %v911, -inf
    %v949 = vmax.f32 %v947, %v948
    %v950 = vrot.slane %v949, 4
    %v951 = vmax.f32 %v949, %v950
    %v952 = vrot.slane %v951, 2
    %v953 = vmax.f32 %v951, %v952
    %v954 = vrot.slane %v953, 1
    %v955 = vmax.f32 %v953, %v954
    %v956 = vsel %vm266, %v912, -inf
    %v957 = vsel %vm266, %v913, -inf
    %v958 = vmax.f32 %v956, %v957
    %v959 = vrot.slane %v958, 4
    %v960 = vmax.f32 %v958, %v959
    %v961 = vrot.slane %v960, 2
    %v962 = vmax.f32 %v960, %v961
    %v963 = vrot.slane %v962, 1
    %v964 = vmax.f32 %v962, %v963
    %v965 = vsel %vm266, %v914, -inf
    %v966 = vsel %vm266, %v915, -inf
    %v967 = vmax.f32 %v965, %v966
    %v968 = vrot.slane %v967, 4
    %v969 = vmax.f32 %v967, %v968
    %v970 = vrot.slane %v969, 2
    %v971 = vmax.f32 %v969, %v970
    %v972 = vrot.slane %v971, 1
    %v973 = vmax.f32 %v971, %v972
    %v974 = vsel %vm266, %v916, -inf
    %v975 = vsel %vm266, %v917, -inf
    %v976 = vmax.f32 %v974, %v975
    %v977 = vrot.slane %v976, 4
    %v978 = vmax.f32 %v976, %v977
    %v979 = vrot.slane %v978, 2
    %v980 = vmax.f32 %v978, %v979
    %v981 = vrot.slane %v980, 1
    %v982 = vmax.f32 %v980, %v981
    %v983 = vsel %vm266, %v918, -inf
    %v984 = vsel %vm266, %v919, -inf
    %v985 = vmax.f32 %v983, %v984
    %v986 = vrot.slane %v985, 4
    %v987 = vmax.f32 %v985, %v986
    %v988 = vrot.slane %v987, 2
    %v989 = vmax.f32 %v987, %v988
    %v990 = vrot.slane %v989, 1
    %v991 = vmax.f32 %v989, %v990
    %v992 = vld [vmem:[%s1 + $0xc8] sm:$0xff]
    %v993 = vld [vmem:[%s1 + $0xd0] sm:$0xff]
    %v994 = vld [vmem:[%s1 + $0xd8] sm:$0xff]
    %v995 = vld [vmem:[%s1 + $0xe0] sm:$0xff]
    %v996 = vld [vmem:[%s1 + $0xe8] sm:$0xff]
    %v997 = vld [vmem:[%s1 + $0xf0] sm:$0xff]
    %v998 = vld [vmem:[%s1 + $0xf8] sm:$0xff]
    %v999 = vld [vmem:[%s1 + $0x100] sm:$0xff]
    %v1000 = vld [vmem:[%s2 + $0x4] sm:$0x1]
    %v1001 = vlaneseq
    %v1002 = vshrl.u32 %v1001, 7
    %v1003 = vsub.s32 0, %v1002
    %v1004 = vrot.slane %v1000, %v1003
    %vm1013 = vcmask 1041409
    %v1014 = vsel %vm1013, %v937, %v928
    %vm1015 = vcmask 1042434
    %v1016 = vsel %vm1015, %v946, %v1014
    %vm1017 = vcmask 1043459
    %v1018 = vsel %vm1017, %v955, %v1016
    %vm1019 = vcmask 1044484
    %v1020 = vsel %vm1019, %v964, %v1018
    %vm1021 = vcmask 1045509
    %v1022 = vsel %vm1021, %v973, %v1020
    %vm1023 = vcmask 1046534
    %v1024 = vsel %vm1023, %v982, %v1022
    %vm1025 = vcmask 1047559
    %v1026 = vsel %vm1025, %v991, %v1024
    %v1027 = vsel %vm266, %v1026, 0
    %1029 = vmatprep.subr.mxu0 0.0
    %1030 = vmatpush1.msra.mxu0 0.0
    %1031 = vmatprep.subr.mxu0 0.0
    %1032 = vmatpush1.msra.mxu0 0.0
    %1033 = vmatprep.subr.mxu0 0.0
    %1034 = vmatpush1.msra.mxu0 0.0
    %1035 = vmatprep.subr.mxu0 0.0
    %1036 = vmatpush1.msra.mxu0 0.0
    %1037 = vmatprep.subr.mxu0 0.0
    %1038 = vmatpush1.msra.mxu0 0.0
    %1039 = vmatprep.subr.mxu0 0.0
    %1040 = vmatpush1.msra.mxu0 0.0
    %1041 = vmatprep.subr.mxu0 0.0
    %1042 = vmatpush1.msra.mxu0 0.0
    %1043 = vmatprep.subr.mxu0 0.0
    %1044 = vmatpush1.msra.mxu0 0.0
    %1045 = vmatprep.subr.mxu0 0.0
    %1046 = vmatpush1.msra.mxu0 %v999
    %1047 = vmatprep.subr.mxu0 0.0
    %1048 = vmatpush1.msra.mxu0 %v998
    %1049 = vmatprep.subr.mxu0 0.0
    %1050 = vmatpush1.msra.mxu0 %v997
    %1051 = vmatprep.subr.mxu0 0.0
    %1052 = vmatpush1.msra.mxu0 %v996
    %1053 = vmatprep.subr.mxu0 0.0
    %1054 = vmatpush1.msra.mxu0 %v995
    %1055 = vmatprep.subr.mxu0 0.0
    %1056 = vmatpush1.msra.mxu0 %v994
    %1057 = vmatprep.subr.mxu0 0.0
    %1058 = vmatpush1.msra.mxu0 %v993
    %1059 = vmatprep.subr.mxu0 0.0
    %1060 = vmatpush1.msra.mxu0 %v992
    %1061 = vmatprep.subr.mxu0 0.0
    %1062 = vmatpush2.msra.mxu0 0.0
    %1063 = vmatprep.subr.mxu0 0.0
    %1064 = vmatpush2.msra.mxu0 0.0
    %1065 = vmatprep.subr.mxu0 0.0
    %1066 = vmatpush2.msra.mxu0 0.0
    %1067 = vmatprep.subr.mxu0 0.0
    %1068 = vmatpush2.msra.mxu0 0.0
    %1069 = vmatprep.subr.mxu0 0.0
    %1070 = vmatpush2.msra.mxu0 0.0
    %1071 = vmatprep.subr.mxu0 0.0
    %1072 = vmatpush2.msra.mxu0 0.0
    %1073 = vmatprep.subr.mxu0 0.0
    %1074 = vmatpush2.msra.mxu0 0.0
    %1075 = vmatprep.subr.mxu0 0.0
    %1076 = vmatpush2.msra.mxu0 0.0
    %1077 = vmatprep.subr.mxu0 0.0
    %1078 = vmatpush2.msra.mxu0 0.0
    %1079 = vmatprep.subr.mxu0 0.0
    %1080 = vmatpush2.msra.mxu0 0.0
    %1081 = vmatprep.subr.mxu0 0.0
    %1082 = vmatpush2.msra.mxu0 0.0
    %1083 = vmatprep.subr.mxu0 0.0
    %1084 = vmatpush2.msra.mxu0 0.0
    %1085 = vmatprep.subr.mxu0 0.0
    %1086 = vmatpush2.msra.mxu0 0.0
    %1087 = vmatprep.subr.mxu0 0.0
    %1088 = vmatpush2.msra.mxu0 0.0
    %1089 = vmatprep.subr.mxu0 0.0
    %1090 = vmatpush2.msra.mxu0 0.0
    %1091 = vmatprep.subr.mxu0 0.0
    %1092 = vmatpush2.msra.mxu0 0.0
    %1093 = vmatprep.mubr.f32.mxu0 0.0
    %1094 = vmatmul.mubr.f32.gmra.mxu0 %v1027
    %v1095 = vpop.f32.mrf.mxu0
    %v1096 = vadd.f32 %v1004, %v1095
    %v1097 = vpop.f32.mrf.mxu0
    %1098 = vdwg.mxu0
    %v1099 = vmax.f32 %v1096, 0.0
    %v1100 = vld [vmem:[%s1 + $0x108] sm:$0xff]
    %v1101 = vld [vmem:[%s1 + $0x110] sm:$0xff]
    %v1102 = vld [vmem:[%s1 + $0x118] sm:$0xff]
    %v1103 = vld [vmem:[%s1 + $0x120] sm:$0xff]
    %v1104 = vld [vmem:[%s1 + $0x128] sm:$0xff]
    %v1105 = vld [vmem:[%s1 + $0x130] sm:$0xff]
    %v1106 = vld [vmem:[%s1 + $0x138] sm:$0xff]
    %v1107 = vld [vmem:[%s1 + $0x140] sm:$0xff]
    %v1108 = vld [vmem:[%s2 + $0x5] sm:$0x1]
    %v1109 = vlaneseq
    %v1110 = vshrl.u32 %v1109, 7
    %v1111 = vsub.s32 0, %v1110
    %v1112 = vrot.slane %v1108, %v1111
    %v1114 = vsel %vm266, %v1099, 0
    %1116 = vmatprep.subr.mxu0 0.0
    %1117 = vmatpush1.msra.mxu0 0.0
    %1118 = vmatprep.subr.mxu0 0.0
    %1119 = vmatpush1.msra.mxu0 0.0
    %1120 = vmatprep.subr.mxu0 0.0
    %1121 = vmatpush1.msra.mxu0 0.0
    %1122 = vmatprep.subr.mxu0 0.0
    %1123 = vmatpush1.msra.mxu0 0.0
    %1124 = vmatprep.subr.mxu0 0.0
    %1125 = vmatpush1.msra.mxu0 0.0
    %1126 = vmatprep.subr.mxu0 0.0
    %1127 = vmatpush1.msra.mxu0 0.0
    %1128 = vmatprep.subr.mxu0 0.0
    %1129 = vmatpush1.msra.mxu0 0.0
    %1130 = vmatprep.subr.mxu0 0.0
    %1131 = vmatpush1.msra.mxu0 0.0
    %1132 = vmatprep.subr.mxu0 0.0
    %1133 = vmatpush1.msra.mxu0 %v1107
    %1134 = vmatprep.subr.mxu0 0.0
    %1135 = vmatpush1.msra.mxu0 %v1106
    %1136 = vmatprep.subr.mxu0 0.0
    %1137 = vmatpush1.msra.mxu0 %v1105
    %1138 = vmatprep.subr.mxu0 0.0
    %1139 = vmatpush1.msra.mxu0 %v1104
    %1140 = vmatprep.subr.mxu0 0.0
    %1141 = vmatpush1.msra.mxu0 %v1103
    %1142 = vmatprep.subr.mxu0 0.0
    %1143 = vmatpush1.msra.mxu0 %v1102
    %1144 = vmatprep.subr.mxu0 0.0
    %1145 = vmatpush1.msra.mxu0 %v1101
    %1146 = vmatprep.subr.mxu0 0.0
    %1147 = vmatpush1.msra.mxu0 %v1100
    %1148 = vmatprep.subr.mxu0 0.0
    %1149 = vmatpush2.msra.mxu0 0.0
    %1150 = vmatprep.subr.mxu0 0.0
    %1151 = vmatpush2.msra.mxu0 0.0
    %1152 = vmatprep.subr.mxu0 0.0
    %1153 = vmatpush2.msra.mxu0 0.0
    %1154 = vmatprep.subr.mxu0 0.0
    %1155 = vmatpush2.msra.mxu0 0.0
    %1156 = vmatprep.subr.mxu0 0.0
    %1157 = vmatpush2.msra.mxu0 0.0
    %1158 = vmatprep.subr.mxu0 0.0
    %1159 = vmatpush2.msra.mxu0 0.0
    %1160 = vmatprep.subr.mxu0 0.0
    %1161 = vmatpush2.msra.mxu0 0.0
    %1162 = vmatprep.subr.mxu0 0.0
    %1163 = vmatpush2.msra.mxu0 0.0
    %1164 = vmatprep.subr.mxu0 0.0
    %1165 = vmatpush2.msra.mxu0 0.0
    %1166 = vmatprep.subr.mxu0 0.0
    %1167 = vmatpush2.msra.mxu0 0.0
    %1168 = vmatprep.subr.mxu0 0.0
    %1169 = vmatpush2.msra.mxu0 0.0
    %1170 = vmatprep.subr.mxu0 0.0
    %1171 = vmatpush2.msra.mxu0 0.0
    %1172 = vmatprep.subr.mxu0 0.0
    %1173 = vmatpush2.msra.mxu0 0.0
    %1174 = vmatprep.subr.mxu0 0.0
    %1175 = vmatpush2.msra.mxu0 0.0
    %1176 = vmatprep.subr.mxu0 0.0
    %1177 = vmatpush2.msra.mxu0 0.0
    %1178 = vmatprep.subr.mxu0 0.0
    %1179 = vmatpush2.msra.mxu0 0.0
    %1180 = vmatprep.mubr.f32.mxu0 0.0
    %1181 = vmatmul.mubr.f32.gmra.mxu0 %v1114
    %v1182 = vpop.f32.mrf.mxu0
    %v1183 = vadd.f32 %v1112, %v1182
    %v1184 = vpop.f32.mrf.mxu0
    %1185 = vdwg.mxu0
    %v1186 = vmax.f32 %v1183, 0.0
    %v1187 = vld [vmem:[%s1 + $0x148] sm:$0xff]
    %v1188 = vld [vmem:[%s1 + $0x150] sm:$0xff]
    %v1189 = vld [vmem:[%s1 + $0x158] sm:$0xff]
    %v1190 = vld [vmem:[%s1 + $0x160] sm:$0xff]
    %v1191 = vld [vmem:[%s1 + $0x168] sm:$0xff]
    %v1192 = vld [vmem:[%s1 + $0x170] sm:$0xff]
    %v1193 = vld [vmem:[%s1 + $0x178] sm:$0xff]
    %v1194 = vld [vmem:[%s1 + $0x180] sm:$0xff]
    %v1195 = vld [vmem:[%s2 + $0x6] sm:$0x1]
    %v1196 = vlaneseq
    %v1197 = vshrl.u32 %v1196, 7
    %v1198 = vsub.s32 0, %v1197
    %v1199 = vrot.slane %v1195, %v1198
    %v1201 = vsel %vm266, %v1186, 0
    %1203 = vmatprep.subr.mxu0 0.0
    %1204 = vmatpush1.msra.mxu0 0.0
    %1205 = vmatprep.subr.mxu0 0.0
    %1206 = vmatpush1.msra.mxu0 0.0
    %1207 = vmatprep.subr.mxu0 0.0
    %1208 = vmatpush1.msra.mxu0 0.0
    %1209 = vmatprep.subr.mxu0 0.0
    %1210 = vmatpush1.msra.mxu0 0.0
    %1211 = vmatprep.subr.mxu0 0.0
    %1212 = vmatpush1.msra.mxu0 0.0
    %1213 = vmatprep.subr.mxu0 0.0
    %1214 = vmatpush1.msra.mxu0 0.0
    %1215 = vmatprep.subr.mxu0 0.0
    %1216 = vmatpush1.msra.mxu0 0.0
    %1217 = vmatprep.subr.mxu0 0.0
    %1218 = vmatpush1.msra.mxu0 0.0
    %1219 = vmatprep.subr.mxu0 0.0
    %1220 = vmatpush1.msra.mxu0 %v1194
    %1221 = vmatprep.subr.mxu0 0.0
    %1222 = vmatpush1.msra.mxu0 %v1193
    %1223 = vmatprep.subr.mxu0 0.0
    %1224 = vmatpush1.msra.mxu0 %v1192
    %1225 = vmatprep.subr.mxu0 0.0
    %1226 = vmatpush1.msra.mxu0 %v1191
    %1227 = vmatprep.subr.mxu0 0.0
    %1228 = vmatpush1.msra.mxu0 %v1190
    %1229 = vmatprep.subr.mxu0 0.0
    %1230 = vmatpush1.msra.mxu0 %v1189
    %1231 = vmatprep.subr.mxu0 0.0
    %1232 = vmatpush1.msra.mxu0 %v1188
    %1233 = vmatprep.subr.mxu0 0.0
    %1234 = vmatpush1.msra.mxu0 %v1187
    %1235 = vmatprep.subr.mxu0 0.0
    %1236 = vmatpush2.msra.mxu0 0.0
    %1237 = vmatprep.subr.mxu0 0.0
    %1238 = vmatpush2.msra.mxu0 0.0
    %1239 = vmatprep.subr.mxu0 0.0
    %1240 = vmatpush2.msra.mxu0 0.0
    %1241 = vmatprep.subr.mxu0 0.0
    %1242 = vmatpush2.msra.mxu0 0.0
    %1243 = vmatprep.subr.mxu0 0.0
    %1244 = vmatpush2.msra.mxu0 0.0
    %1245 = vmatprep.subr.mxu0 0.0
    %1246 = vmatpush2.msra.mxu0 0.0
    %1247 = vmatprep.subr.mxu0 0.0
    %1248 = vmatpush2.msra.mxu0 0.0
    %1249 = vmatprep.subr.mxu0 0.0
    %1250 = vmatpush2.msra.mxu0 0.0
    %1251 = vmatprep.subr.mxu0 0.0
    %1252 = vmatpush2.msra.mxu0 0.0
    %1253 = vmatprep.subr.mxu0 0.0
    %1254 = vmatpush2.msra.mxu0 0.0
    %1255 = vmatprep.subr.mxu0 0.0
    %1256 = vmatpush2.msra.mxu0 0.0
    %1257 = vmatprep.subr.mxu0 0.0
    %1258 = vmatpush2.msra.mxu0 0.0
    %1259 = vmatprep.subr.mxu0 0.0
    %1260 = vmatpush2.msra.mxu0 0.0
    %1261 = vmatprep.subr.mxu0 0.0
    %1262 = vmatpush2.msra.mxu0 0.0
    %1263 = vmatprep.subr.mxu0 0.0
    %1264 = vmatpush2.msra.mxu0 0.0
    %1265 = vmatprep.subr.mxu0 0.0
    %1266 = vmatpush2.msra.mxu0 0.0
    %1267 = vmatprep.mubr.f32.mxu0 0.0
    %1268 = vmatmul.mubr.f32.gmra.mxu0 %v1201
    %v1269 = vpop.f32.mrf.mxu0
    %v1270 = vadd.f32 %v1199, %v1269
    %v1271 = vpop.f32.mrf.mxu0
    %1272 = vdwg.mxu0
    %v1273 = vmax.f32 %v1270, 0.0
    %v1274 = vld [vmem:[%s3] sm:$0xff]
    %v1275 = vld [vmem:[%s3 + $0x8] sm:$0xff]
    %v1276 = vld [vmem:[%s3 + $0x10] sm:$0xff]
    %v1277 = vld [vmem:[%s3 + $0x18] sm:$0xff]
    %v1278 = vld [vmem:[%s3 + $0x20] sm:$0xff]
    %v1279 = vld [vmem:[%s3 + $0x28] sm:$0xff]
    %v1280 = vld [vmem:[%s3 + $0x30] sm:$0xff]
    %v1281 = vld [vmem:[%s3 + $0x38] sm:$0xff]
    %v1282 = vld [vmem:[%s4] sm:$0x1]
    %v1284 = vlaneseq
    %v1285 = vshrl.u32 %v1284, 7
    %v1286 = vsub.s32 0, %v1285
    %v1287 = vrot.slane %v1282, %v1286
    %v1290 = vsel %vm266, %v1273, 0
    %1292 = vmatprep.subr.mxu0 0.0
    %1293 = vmatpush1.msra.mxu0 0.0
    %1294 = vmatprep.subr.mxu0 0.0
    %1295 = vmatpush1.msra.mxu0 0.0
    %1296 = vmatprep.subr.mxu0 0.0
    %1297 = vmatpush1.msra.mxu0 0.0
    %1298 = vmatprep.subr.mxu0 0.0
    %1299 = vmatpush1.msra.mxu0 0.0
    %1300 = vmatprep.subr.mxu0 0.0
    %1301 = vmatpush1.msra.mxu0 0.0
    %1302 = vmatprep.subr.mxu0 0.0
    %1303 = vmatpush1.msra.mxu0 0.0
    %1304 = vmatprep.subr.mxu0 0.0
    %1305 = vmatpush1.msra.mxu0 0.0
    %1306 = vmatprep.subr.mxu0 0.0
    %1307 = vmatpush1.msra.mxu0 0.0
    %1308 = vmatprep.subr.mxu0 0.0
    %1309 = vmatpush1.msra.mxu0 %v1281
    %1310 = vmatprep.subr.mxu0 0.0
    %1311 = vmatpush1.msra.mxu0 %v1280
    %1312 = vmatprep.subr.mxu0 0.0
    %1313 = vmatpush1.msra.mxu0 %v1279
    %1314 = vmatprep.subr.mxu0 0.0
    %1315 = vmatpush1.msra.mxu0 %v1278
    %1316 = vmatprep.subr.mxu0 0.0
    %1317 = vmatpush1.msra.mxu0 %v1277
    %1318 = vmatprep.subr.mxu0 0.0
    %1319 = vmatpush1.msra.mxu0 %v1276
    %1320 = vmatprep.subr.mxu0 0.0
    %1321 = vmatpush1.msra.mxu0 %v1275
    %1322 = vmatprep.subr.mxu0 0.0
    %1323 = vmatpush1.msra.mxu0 %v1274
    %1324 = vmatprep.subr.mxu0 0.0
    %1325 = vmatpush2.msra.mxu0 0.0
    %1326 = vmatprep.subr.mxu0 0.0
    %1327 = vmatpush2.msra.mxu0 0.0
    %1328 = vmatprep.subr.mxu0 0.0
    %1329 = vmatpush2.msra.mxu0 0.0
    %1330 = vmatprep.subr.mxu0 0.0
    %1331 = vmatpush2.msra.mxu0 0.0
    %1332 = vmatprep.subr.mxu0 0.0
    %1333 = vmatpush2.msra.mxu0 0.0
    %1334 = vmatprep.subr.mxu0 0.0
    %1335 = vmatpush2.msra.mxu0 0.0
    %1336 = vmatprep.subr.mxu0 0.0
    %1337 = vmatpush2.msra.mxu0 0.0
    %1338 = vmatprep.subr.mxu0 0.0
    %1339 = vmatpush2.msra.mxu0 0.0
    %1340 = vmatprep.subr.mxu0 0.0
    %1341 = vmatpush2.msra.mxu0 0.0
    %1342 = vmatprep.subr.mxu0 0.0
    %1343 = vmatpush2.msra.mxu0 0.0
    %1344 = vmatprep.subr.mxu0 0.0
    %1345 = vmatpush2.msra.mxu0 0.0
    %1346 = vmatprep.subr.mxu0 0.0
    %1347 = vmatpush2.msra.mxu0 0.0
    %1348 = vmatprep.subr.mxu0 0.0
    %1349 = vmatpush2.msra.mxu0 0.0
    %1350 = vmatprep.subr.mxu0 0.0
    %1351 = vmatpush2.msra.mxu0 0.0
    %1352 = vmatprep.subr.mxu0 0.0
    %1353 = vmatpush2.msra.mxu0 0.0
    %1354 = vmatprep.subr.mxu0 0.0
    %1355 = vmatpush2.msra.mxu0 0.0
    %1356 = vmatprep.mubr.f32.mxu0 0.0
    %1357 = vmatmul.mubr.f32.gmra.mxu0 %v1290
    %v1358 = vpop.f32.mrf.mxu0
    %v1359 = vadd.f32 %v1287, %v1358
    %v1360 = vpop.f32.mrf.mxu0
    %1361 = vdwg.mxu0
    %v1362 = vxor.u32 %v1359, 2147483648
    %v1363 = vmul.f32 %v1362, 1.442695
    %v1364 = vpow.pop %v1363
    %v1365 = vadd.f32 %v1364, 1.0
    %v1366 = vrcp.pop %v1365
    %v1367 = vmul.f32 1.0, %v1366
    %1368 = vst [vmem:[#allocation2] sm:$0xff] %v1367
    // Predicated region
    $region22: #{tpu_custom_call.1} parent=1 // pred_check
      _
    $region23: #{tpu_custom_call.1} parent=1 // pred_check_branch
      %1370 = sbr.rel (0) target = $region25
    $region24: #{tpu_custom_call.1} parent=1 // pred_region
      %s1372 = ssub.s32 128, 128
      %1373 = vsyncadd [#allocation3], %s1372
      %s1375 = sshll.u32 [#allocation2], 4
      %s1376 = int_to_ptr.vmem [resolvable:$true] %s1375
      %1378 = dma.vmem_to_hbm [thread:$0]  %s1376, 128, %s5, [#allocation3]
    $region25: #{tpu_custom_call.1} parent=1 // pred_fallthru
      _
    // Predicated region
    $region26: #{tpu_custom_call.1} parent=1 // pred_check
      _
    $region27: #{tpu_custom_call.1} parent=1 // pred_check_branch
      %1380 = sbr.rel (0) target = $region29
    $region28: #{tpu_custom_call.1} parent=1 // pred_region
      %1381 = dma.done [#allocation3], 128
    $region29: #{tpu_custom_call.1} parent=1 // pred_fallthru
      _
    %1382 = vsyncpa [#allocation3], 1

</llo_original>
